<compile_context>
chip_gen: v5e
topology: v5e:2x2
jax: 0.10.0
libtpu: 0.0.40
codegen_flags: <defaults>
</compile_context>

<pallas_src>
import jax
import jax.numpy as jnp
from jax.experimental import pallas as pl
from jax.experimental.pallas import tpu as pltpu


# --------------------------------------------------------------------------
# VMEM budget: generation-aware (v5e/v6e: 128 MiB physical, v7x: 64 MiB/TC).
# --------------------------------------------------------------------------
def _vmem_limit_bytes():
    cap = 64 << 20  # conservative fallback == v7x physical VMEM per TensorCore
    try:
        info = pltpu.get_tpu_info()
        cap = int(getattr(info, "vmem_capacity_bytes", cap) or cap)
    except Exception:
        pass
    return (cap * 3) // 4  # headroom for double buffers / compiler scratch


def _full_spec(shape):
    ndim = len(shape)
    return pl.BlockSpec(shape, lambda: (0,) * ndim)


# --------------------------------------------------------------------------
# Fused single-block kernel (everything resident in VMEM) -- small/medium N.
# --------------------------------------------------------------------------
def _gcn_fused_kernel(a_ref, x_ref, w1_ref, b1_ref, w2_ref, b2_ref,
                      p_ref, wfc_ref, bfc_ref, out_ref):
    a = a_ref[...]                                     # [N, N] bf16 Ahat

    # Layer 1: ReLU(Ahat @ (X @ W1) + b1); bf16 MXU inputs, f32 accumulation.
    h = jnp.dot(x_ref[...], w1_ref[...], preferred_element_type=jnp.float32)
    h = jnp.dot(a, h.astype(jnp.bfloat16), preferred_element_type=jnp.float32)
    h = jnp.maximum(h + b1_ref[...], 0.0)

    # Layer 2: ReLU(Ahat @ (h @ W2) + b2)
    h = jnp.dot(h.astype(jnp.bfloat16), w2_ref[...],
                preferred_element_type=jnp.float32)
    h = jnp.dot(a, h.astype(jnp.bfloat16), preferred_element_type=jnp.float32)
    h = jnp.maximum(h + b2_ref[...], 0.0)

    # global_mean_pool as dense matmul P[G,N] @ h (f32 epilogue).
    pooled = jnp.dot(p_ref[...], h, preferred_element_type=jnp.float32)

    # Final Linear(H -> 1): wfc zero-padded to [H, 128] -> lane-dense store.
    out_ref[...] = (jnp.dot(pooled, wfc_ref[...],
                            preferred_element_type=jnp.float32)
                    + bfc_ref[0, 0])


# --------------------------------------------------------------------------
# Tiled path kernels (large N).
# --------------------------------------------------------------------------
def _xw_kernel(x_ref, w_ref, o_ref):
    # Feature transform X @ W for one row block; bf16 output for aggregation.
    o_ref[...] = jnp.dot(x_ref[...], w_ref[...],
                         preferred_element_type=jnp.float32).astype(o_ref.dtype)


def _aggregate_kernel(a_ref, xw_ref, b_ref, o_ref, acc_ref):
    # o[i] = ReLU( sum_k Ahat[i,k] @ XW[k] + b ), K-reduction in VMEM acc.
    k = pl.program_id(1)

    @pl.when(k == 0)
    def _():
        acc_ref[...] = jnp.zeros_like(acc_ref)

    acc_ref[...] += jnp.dot(a_ref[...], xw_ref[...],
                            preferred_element_type=jnp.float32)

    @pl.when(k == pl.num_programs(1) - 1)
    def _():
        o_ref[...] = jnp.maximum(acc_ref[...] + b_ref[...], 0.0
                                 ).astype(o_ref.dtype)


def _pool_fc_tiled_kernel(p_ref, h_ref, wfc_ref, bfc_ref, out_ref, acc_ref):
    # pooled = sum_k P[:,k] @ h[k]; then FC(H->1) into a lane-dense [G,128].
    k = pl.program_id(0)

    @pl.when(k == 0)
    def _():
        acc_ref[...] = jnp.zeros_like(acc_ref)

    acc_ref[...] += jnp.dot(p_ref[...], h_ref[...],
                            preferred_element_type=jnp.float32)

    @pl.when(k == pl.num_programs(0) - 1)
    def _():
        out_ref[...] = (jnp.dot(acc_ref[...], wfc_ref[...],
                                preferred_element_type=jnp.float32)
                        + bfc_ref[0, 0])


# --------------------------------------------------------------------------
# Plain-JAX glue (dense Ahat / pooling matrix construction).
# --------------------------------------------------------------------------
def _build_adjacency(edge_index, n):
    src, dst = edge_index[0], edge_index[1]
    adj = jnp.zeros((n, n), jnp.float32).at[dst, src].set(1.0)
    adj = adj + jnp.eye(n, dtype=jnp.float32)          # self loops
    deg = jnp.sum(adj, axis=1)
    dinv = jnp.where(deg > 0, 1.0 / jnp.sqrt(deg), 0.0)
    return dinv[:, None] * adj * dinv[None, :]


def _build_pool(batch, n, num_graphs):
    onehot = (batch[None, :] == jnp.arange(num_graphs)[:, None]).astype(jnp.float32)
    counts = jnp.maximum(jnp.sum(onehot, axis=1, keepdims=True), 1.0)
    return onehot / counts


# --------------------------------------------------------------------------
# Forward wrapper (jit-able; num_graphs / tile / force_tiled are static).
# --------------------------------------------------------------------------
def _forward_impl(x, edge_index, batch, params, *, num_graphs, tile=128,
                  force_tiled=None):
    N, F = x.shape
    H = params["w1"].shape[1]
    vmem_limit = _vmem_limit_bytes()

    a_hat = _build_adjacency(edge_index, N)
    pool = _build_pool(batch, N, num_graphs)

    w1 = params["w1"].astype(jnp.bfloat16)
    w2 = params["w2"].astype(jnp.bfloat16)
    b1 = params["b1"].reshape(1, H).astype(jnp.float32)
    b2 = params["b2"].reshape(1, H).astype(jnp.float32)
    # Lane-dense FC: pad wfc [H,1] -> [H,128]; real weights live in column 0.
    wfc_pad = jnp.zeros((H, 128), jnp.float32).at[:, :1].set(
        params["wfc"].astype(jnp.float32))
    bfc = params["bfc"].reshape(1, 1).astype(jnp.float32)

    compiler_params = pltpu.CompilerParams(vmem_limit_bytes=vmem_limit)

    # Rough fully-resident footprint of the fused path (bf16 Ahat dominates).
    resident_bytes = 2 * N * N + 4 * num_graphs * N + 4 * N * (F + 3 * H)
    use_tiled = (resident_bytes > vmem_limit // 2) if force_tiled is None \
        else force_tiled

    if not use_tiled:
        operands = (a_hat.astype(jnp.bfloat16), x.astype(jnp.bfloat16),
                    w1, b1, w2, b2, pool, wfc_pad, bfc)
        in_specs = [_full_spec(op.shape) for op in operands[:-1]]
        in_specs.append(pl.BlockSpec(memory_space=pltpu.MemorySpace.SMEM))
        out = pl.pallas_call(
            _gcn_fused_kernel,
            out_shape=jax.ShapeDtypeStruct((num_graphs, 128), jnp.float32),
            in_specs=in_specs,
            out_specs=_full_spec((num_graphs, 128)),
            compiler_params=compiler_params,
        )(*operands)
        return out[:, 0]

    # ------------------------ tiled path (large N) ------------------------
    tm = tk = tile
    n_pad = ((N + tile - 1) // tile) * tile
    a_pad = jnp.zeros((n_pad, n_pad), jnp.bfloat16).at[:N, :N].set(
        a_hat.astype(jnp.bfloat16))
    x_pad = jnp.zeros((n_pad, F), jnp.bfloat16).at[:N, :].set(
        x.astype(jnp.bfloat16))
    pool_pad = jnp.zeros((num_graphs, n_pad), jnp.bfloat16).at[:, :N].set(
        pool.astype(jnp.bfloat16))

    def feature_transform(feats, w):
        # XW computed once per layer (row-parallel), not once per (row, K) block.
        fin = feats.shape[1]
        return pl.pallas_call(
            _xw_kernel,
            out_shape=jax.ShapeDtypeStruct((n_pad, H), jnp.bfloat16),
            grid_spec=pltpu.PrefetchScalarGridSpec(
                num_scalar_prefetch=0,
                grid=(n_pad // tm,),
                in_specs=[
                    pl.BlockSpec((tm, fin), lambda i: (i, 0)),
                    pl.BlockSpec((fin, H), lambda i: (0, 0)),
                ],
                out_specs=pl.BlockSpec((tm, H), lambda i: (i, 0)),
            ),
            compiler_params=pltpu.CompilerParams(
                dimension_semantics=("parallel",),
                vmem_limit_bytes=vmem_limit,
            ),
        )(feats, w)

    def aggregate(a, xw, b):
        # ReLU(Ahat @ XW + b), row-parallel over i, K-reduction over k.
        return pl.pallas_call(
            _aggregate_kernel,
            out_shape=jax.ShapeDtypeStruct((n_pad, H), jnp.bfloat16),
            grid_spec=pltpu.PrefetchScalarGridSpec(
                num_scalar_prefetch=0,
                grid=(n_pad // tm, n_pad // tk),
                in_specs=[
                    pl.BlockSpec((tm, tk), lambda i, k: (i, k)),   # Ahat block
                    pl.BlockSpec((tk, H), lambda i, k: (k, 0)),    # XW block
                    pl.BlockSpec((1, H), lambda i, k: (0, 0)),     # bias
                ],
                out_specs=pl.BlockSpec((tm, H), lambda i, k: (i, 0)),
                scratch_shapes=[pltpu.VMEM((tm, H), jnp.float32)],
            ),
            compiler_params=pltpu.CompilerParams(
                dimension_semantics=("parallel", "arbitrary"),
                vmem_limit_bytes=vmem_limit,
            ),
        )(a, xw, b)

    h1 = aggregate(a_pad, feature_transform(x_pad, w1), b1)   # [n_pad, H] bf16
    h2 = aggregate(a_pad, feature_transform(h1, w2), b2)      # [n_pad, H] bf16

    # global_mean_pool + FC as a K-reduction grid (no full residency needed).
    g = num_graphs
    out = pl.pallas_call(
        _pool_fc_tiled_kernel,
        out_shape=jax.ShapeDtypeStruct((g, 128), jnp.float32),
        grid_spec=pltpu.PrefetchScalarGridSpec(
            num_scalar_prefetch=0,
            grid=(n_pad // tk,),
            in_specs=[
                pl.BlockSpec((g, tk), lambda k: (0, k)),        # pool block
                pl.BlockSpec((tk, H), lambda k: (k, 0)),        # h2 block
                pl.BlockSpec((H, 128), lambda k: (0, 0)),       # fc weight (padded)
                pl.BlockSpec(memory_space=pltpu.MemorySpace.SMEM),  # fc bias
            ],
            out_specs=pl.BlockSpec((g, 128), lambda k: (0, 0)),
            scratch_shapes=[pltpu.VMEM((g, H), jnp.float32)],
        ),
        compiler_params=pltpu.CompilerParams(
            dimension_semantics=("arbitrary",),
            vmem_limit_bytes=vmem_limit,
        ),
    )(pool_pad, h2, wfc_pad, bfc)
    return out[:, 0]


gcn_model_forward = jax.jit(
    _forward_impl, static_argnames=("num_graphs", "tile", "force_tiled"))


# --------------------------------------------------------------------------
# Pure-JAX f32 reference (mirrors the PyTorch module) for validation.
# --------------------------------------------------------------------------
def _reference_forward(x, edge_index, batch, params, num_graphs):
    n = x.shape[0]
    a_hat = _build_adjacency(edge_index, n)
    pool = _build_pool(batch, n, num_graphs)
    h = jnp.maximum(a_hat @ (x @ params["w1"]) + params["b1"], 0.0)
    h = jnp.maximum(a_hat @ (h @ params["w2"]) + params["b2"], 0.0)
    pooled = pool @ h
    return (pooled @ params["wfc"] + params["bfc"]).reshape(-1)


def _init_params(key, num_node_features, hidden_dim):
    k1, k2, k3, k4, k5, k6 = jax.random.split(key, 6)
    glorot = lambda k, shape: (jax.random.normal(k, shape, jnp.float32)
                               * jnp.sqrt(2.0 / (shape[0] + shape[1])))
    return {
        "w1": glorot(k1, (num_node_features, hidden_dim)),
        "b1": 0.01 * jax.random.normal(k2, (hidden_dim,), jnp.float32),
        "w2": glorot(k3, (hidden_dim, hidden_dim)),
        "b2": 0.01 * jax.random.normal(k4, (hidden_dim,), jnp.float32),
        "wfc": glorot(k5, (hidden_dim, 1)),
        "bfc": 0.01 * jax.random.normal(k6, (1,), jnp.float32),
    }


# --------------------------------------------------------------------------
# Driver
# --------------------------------------------------------------------------
if __name__ == "__main__":
    num_node_features = 20
    hidden_dim = 64

    key = jax.random.PRNGKey(0)
    kparam, kx = jax.random.split(key)
    params = _init_params(kparam, num_node_features, hidden_dim)

    # Small synthetic batch: 3 graphs (ring topology), 70 + 70 + 60 = 200 nodes.
    sizes = [70, 70, 60]
    N = sum(sizes)
    num_graphs = len(sizes)
    x = jax.random.normal(kx, (N, num_node_features), jnp.float32)

    src, dst, batch_list = [], [], []
    offset = 0
    for g, sz in enumerate(sizes):
        for i in range(sz):
            j = (i + 1) % sz
            src += [offset + i, offset + j]      # undirected: both directions
            dst += [offset + j, offset + i]
        batch_list += [g] * sz
        offset += sz
    edge_index = jnp.array([src, dst], dtype=jnp.int32)
    batch = jnp.array(batch_list, dtype=jnp.int32)

    ref = _reference_forward(x, edge_index, batch, params, num_graphs)

    # Fused fully-resident path.
    out_fused = gcn_model_forward(x, edge_index, batch, params,
                                  num_graphs=num_graphs, force_tiled=False)
    # Tiled path (pads N=200 -> 256; XW once per layer, aggregation grid (2,2),
    # pooling reduction grid (2,)).
    out_tiled = gcn_model_forward(x, edge_index, batch, params,
                                  num_graphs=num_graphs, tile=128,
                                  force_tiled=True)
    jax.block_until_ready((out_fused, out_tiled))

    assert out_fused.shape == (num_graphs,), out_fused.shape
    assert out_tiled.shape == (num_graphs,), out_tiled.shape
    assert jnp.allclose(out_fused, ref, atol=5e-2, rtol=5e-2), (out_fused, ref)
    assert jnp.allclose(out_tiled, ref, atol=5e-2, rtol=5e-2), (out_tiled, ref)
    print("KERNEL_OK")
</pallas_src>

<mosaic_0001>
module attributes {stable_mosaic.version = 11 : i64} {
  func.func @_gcn_fused_kernel(%arg0: memref<200x200xbf16, #tpu.memory_space<vmem>>, %arg1: memref<200x20xbf16, #tpu.memory_space<vmem>>, %arg2: memref<20x64xbf16, #tpu.memory_space<vmem>>, %arg3: memref<1x64xf32, #tpu.memory_space<vmem>>, %arg4: memref<64x64xbf16, #tpu.memory_space<vmem>>, %arg5: memref<1x64xf32, #tpu.memory_space<vmem>>, %arg6: memref<3x200xf32, #tpu.memory_space<vmem>>, %arg7: memref<64x128xf32, #tpu.memory_space<vmem>>, %arg8: memref<1x1xf32, #tpu.memory_space<smem>>, %arg9: memref<3x128xf32, #tpu.memory_space<vmem>>) attributes {dimension_semantics = [], scalar_prefetch = 0 : i64, scratch_operands = 0 : i64, tpu.core_type = #tpu.core_type<tc>} {
    %c0 = arith.constant 0 : index
    %c0_0 = arith.constant 0 : index
    %0 = vector.load %arg0[%c0, %c0_0] : memref<200x200xbf16, #tpu.memory_space<vmem>>, vector<200x200xbf16>
    %c0_1 = arith.constant 0 : index
    %c0_2 = arith.constant 0 : index
    %1 = vector.load %arg1[%c0_1, %c0_2] : memref<200x20xbf16, #tpu.memory_space<vmem>>, vector<200x20xbf16>
    %c0_3 = arith.constant 0 : index
    %c0_4 = arith.constant 0 : index
    %2 = vector.load %arg2[%c0_3, %c0_4] : memref<20x64xbf16, #tpu.memory_space<vmem>>, vector<20x64xbf16>
    %cst = arith.constant dense<0.000000e+00> : vector<200x64xf32>
    %3 = tpu.matmul %1, %2, %cst {dimension_numbers = #tpu.dot_dimension_numbers<[1], [0], [0], [1], [0, 0, 1, 1], [], []>} : vector<200x20xbf16>, vector<20x64xbf16>, vector<200x64xf32> -> vector<200x64xf32>
    %4 = arith.truncf %3 : vector<200x64xf32> to vector<200x64xbf16>
    %cst_5 = arith.constant dense<0.000000e+00> : vector<200x64xf32>
    %5 = tpu.matmul %0, %4, %cst_5 {dimension_numbers = #tpu.dot_dimension_numbers<[1], [0], [0], [1], [0, 0, 1, 1], [], []>} : vector<200x200xbf16>, vector<200x64xbf16>, vector<200x64xf32> -> vector<200x64xf32>
    %c0_6 = arith.constant 0 : index
    %c0_7 = arith.constant 0 : index
    %6 = vector.load %arg3[%c0_6, %c0_7] : memref<1x64xf32, #tpu.memory_space<vmem>>, vector<1x64xf32>
    %7 = vector.broadcast %6 : vector<1x64xf32> to vector<200x64xf32>
    %8 = arith.addf %5, %7 : vector<200x64xf32>
    %cst_8 = arith.constant 0.000000e+00 : f32
    %9 = vector.broadcast %cst_8 : f32 to vector<200x64xf32>
    %10 = arith.maximumf %8, %9 : vector<200x64xf32>
    %11 = arith.truncf %10 : vector<200x64xf32> to vector<200x64xbf16>
    %c0_9 = arith.constant 0 : index
    %c0_10 = arith.constant 0 : index
    %12 = vector.load %arg4[%c0_9, %c0_10] : memref<64x64xbf16, #tpu.memory_space<vmem>>, vector<64x64xbf16>
    %cst_11 = arith.constant dense<0.000000e+00> : vector<200x64xf32>
    %13 = tpu.matmul %11, %12, %cst_11 {dimension_numbers = #tpu.dot_dimension_numbers<[1], [0], [0], [1], [0, 0, 1, 1], [], []>} : vector<200x64xbf16>, vector<64x64xbf16>, vector<200x64xf32> -> vector<200x64xf32>
    %14 = arith.truncf %13 : vector<200x64xf32> to vector<200x64xbf16>
    %cst_12 = arith.constant dense<0.000000e+00> : vector<200x64xf32>
    %15 = tpu.matmul %0, %14, %cst_12 {dimension_numbers = #tpu.dot_dimension_numbers<[1], [0], [0], [1], [0, 0, 1, 1], [], []>} : vector<200x200xbf16>, vector<200x64xbf16>, vector<200x64xf32> -> vector<200x64xf32>
    %c0_13 = arith.constant 0 : index
    %c0_14 = arith.constant 0 : index
    %16 = vector.load %arg5[%c0_13, %c0_14] : memref<1x64xf32, #tpu.memory_space<vmem>>, vector<1x64xf32>
    %17 = vector.broadcast %16 : vector<1x64xf32> to vector<200x64xf32>
    %18 = arith.addf %15, %17 : vector<200x64xf32>
    %cst_15 = arith.constant 0.000000e+00 : f32
    %19 = vector.broadcast %cst_15 : f32 to vector<200x64xf32>
    %20 = arith.maximumf %18, %19 : vector<200x64xf32>
    %c0_16 = arith.constant 0 : index
    %c0_17 = arith.constant 0 : index
    %21 = vector.load %arg6[%c0_16, %c0_17] : memref<3x200xf32, #tpu.memory_space<vmem>>, vector<3x200xf32>
    %cst_18 = arith.constant dense<0.000000e+00> : vector<3x64xf32>
    %22 = tpu.matmul %21, %20, %cst_18 {dimension_numbers = #tpu.dot_dimension_numbers<[1], [0], [0], [1], [0, 0, 1, 1], [], []>} : vector<3x200xf32>, vector<200x64xf32>, vector<3x64xf32> -> vector<3x64xf32>
    %c0_19 = arith.constant 0 : index
    %c0_20 = arith.constant 0 : index
    %23 = vector.load %arg7[%c0_19, %c0_20] : memref<64x128xf32, #tpu.memory_space<vmem>>, vector<64x128xf32>
    %cst_21 = arith.constant dense<0.000000e+00> : vector<3x128xf32>
    %24 = tpu.matmul %22, %23, %cst_21 {dimension_numbers = #tpu.dot_dimension_numbers<[1], [0], [0], [1], [0, 0, 1, 1], [], []>} : vector<3x64xf32>, vector<64x128xf32>, vector<3x128xf32> -> vector<3x128xf32>
    %c0_22 = arith.constant 0 : index
    %c0_23 = arith.constant 0 : index
    %25 = memref.load %arg8[%c0_22, %c0_23] : memref<1x1xf32, #tpu.memory_space<smem>>
    %26 = vector.broadcast %25 : f32 to vector<3x128xf32>
    %27 = arith.addf %24, %26 : vector<3x128xf32>
    %c0_24 = arith.constant 0 : index
    %c0_25 = arith.constant 0 : index
    %28 = vector.load %arg9[%c0_24, %c0_25] : memref<3x128xf32, #tpu.memory_space<vmem>>, vector<3x128xf32>
    tpu.vector_store %arg9[%c0_24, %c0_25], %27 {strides = array<i32>} : memref<3x128xf32, #tpu.memory_space<vmem>>, vector<3x128xf32>,
    return
  }
}

</mosaic_0001>

<llo_original>
// kernel: _forward_impl.1
$region0: #{_forward_impl.1}
  #allocation0 [shape = 'u32[]', space=smem, size = 0x4, offset = 0x4, fixed_abs, tag = 'smem constant byte address 0x4 - core index']
  #allocation1 [shape = 'u32[72,128]{1,0:T(1,128)}', space=vmem, size = 0x9000, scoped, tag = 'internal scratch']
  #allocation2 [shape = 'f32[1,1]{1,0:T(1,128)S(6)}', space=smem, size = 0x200, scoped, tag = 'scoped memory for _forward_impl.1']
  %s0 = inlined_call_operand.vmem [shape: bf16[200,200], index: 0, kind: input, shape index: {}]
  %s1 = inlined_call_operand.vmem [shape: bf16[200,20], index: 1, kind: input, shape index: {}]
  %s2 = inlined_call_operand.vmem [shape: bf16[20,64], index: 2, kind: input, shape index: {}]
  %s3 = inlined_call_operand.vmem [shape: f32[1,64], index: 3, kind: input, shape index: {}]
  %s4 = inlined_call_operand.vmem [shape: bf16[64,64], index: 4, kind: input, shape index: {}]
  %s5 = inlined_call_operand.vmem [shape: f32[1,64], index: 5, kind: input, shape index: {}]
  %s6 = inlined_call_operand.vmem [shape: f32[3,200], index: 6, kind: input, shape index: {}]
  %s7 = inlined_call_operand.vmem [shape: f32[64,128], index: 7, kind: input, shape index: {}]
  %s8 = inlined_call_operand.<no memory space> [shape: f32[1,1], index: 8, kind: input, shape index: {}]
  %s9 = inlined_call_operand.vmem [shape: f32[3,128], index: 9, kind: output, shape index: {}]
  %s10 = sld [smem:[#allocation0]]
  $region46: #{_forward_impl.1} parent=0
    _
  %s12 = ssub.s32 1, %s10
  %s13 = scalar_select 0, %s12, %s10
  %14 = sst [smem:[#allocation2]] %s8
  // Predicated region
  $region2: #{_forward_impl.1} parent=0 // pred_check
    _
  $region3: #{_forward_impl.1} parent=0 // pred_check_branch
    %16 = sbr.rel (0) target = $region5
  $region4: #{_forward_impl.1} parent=0 // pred_region
    _
  $region5: #{_forward_impl.1} parent=0 // pred_fallthru
    _
  // Predicated region
  $region6: #{_forward_impl.1} parent=0 // pred_check
    _
  $region7: #{_forward_impl.1} parent=0 // pred_check_branch
    %18 = sbr.rel (0) target = $region9
  $region8: #{_forward_impl.1} parent=0 // pred_region
    _
  $region9: #{_forward_impl.1} parent=0 // pred_fallthru
    _
  // Predicated region
  $region10: #{_forward_impl.1} parent=0 // pred_check
    _
  $region11: #{_forward_impl.1} parent=0 // pred_check_branch
    %20 = sbr.rel (0) target = $region13
  $region12: #{_forward_impl.1} parent=0 // pred_region
    _
  $region13: #{_forward_impl.1} parent=0 // pred_fallthru
    _
  // Predicated region
  $region14: #{_forward_impl.1} parent=0 // pred_check
    _
  $region15: #{_forward_impl.1} parent=0 // pred_check_branch
    %22 = sbr.rel (0) target = $region17
  $region16: #{_forward_impl.1} parent=0 // pred_region
    _
  $region17: #{_forward_impl.1} parent=0 // pred_fallthru
    _
  // Predicated region
  $region18: #{_forward_impl.1} parent=0 // pred_check
    _
  $region19: #{_forward_impl.1} parent=0 // pred_check_branch
    %24 = sbr.rel (0) target = $region21
  $region20: #{_forward_impl.1} parent=0 // pred_region
    _
  $region21: #{_forward_impl.1} parent=0 // pred_fallthru
    _
  // Predicated region
  $region22: #{_forward_impl.1} parent=0 // pred_check
    _
  $region23: #{_forward_impl.1} parent=0 // pred_check_branch
    %26 = sbr.rel (0) target = $region25
  $region24: #{_forward_impl.1} parent=0 // pred_region
    _
  $region25: #{_forward_impl.1} parent=0 // pred_fallthru
    _
  // Predicated region
  $region26: #{_forward_impl.1} parent=0 // pred_check
    _
  $region27: #{_forward_impl.1} parent=0 // pred_check_branch
    %28 = sbr.rel (0) target = $region29
  $region28: #{_forward_impl.1} parent=0 // pred_region
    _
  $region29: #{_forward_impl.1} parent=0 // pred_fallthru
    _
  // Predicated region
  $region30: #{_forward_impl.1} parent=0 // pred_check
    _
  $region31: #{_forward_impl.1} parent=0 // pred_check_branch
    %30 = sbr.rel (0) target = $region33
  $region32: #{_forward_impl.1} parent=0 // pred_region
    _
  $region33: #{_forward_impl.1} parent=0 // pred_fallthru
    _
  // Predicated region
  $region34: #{_forward_impl.1} parent=0 // pred_check
    _
  $region35: #{_forward_impl.1} parent=0 // pred_check_branch
    %32 = sbr.rel (0) target = $region37
  $region36: #{_forward_impl.1} parent=0 // pred_region
    _
  $region37: #{_forward_impl.1} parent=0 // pred_fallthru
    _
  %v34 = vld [vmem:[%s0] sm:$0xff]
  %v35 = vld [vmem:[%s0 + $0x8] sm:$0xff]
  %v36 = vld [vmem:[%s0 + $0x10] sm:$0xff]
  %v37 = vld [vmem:[%s0 + $0x18] sm:$0xff]
  %v38 = vld [vmem:[%s0 + $0x20] sm:$0xff]
  %v39 = vld [vmem:[%s0 + $0x28] sm:$0xff]
  %v40 = vld [vmem:[%s0 + $0x30] sm:$0xff]
  %v41 = vld [vmem:[%s0 + $0x38] sm:$0xff]
  %v42 = vld [vmem:[%s0 + $0x40] sm:$0xff]
  %v43 = vld [vmem:[%s0 + $0x48] sm:$0xff]
  %v44 = vld [vmem:[%s0 + $0x50] sm:$0xff]
  %v45 = vld [vmem:[%s0 + $0x58] sm:$0xff]
  %v46 = vld [vmem:[%s0 + $0x60] sm:$0xff]
  %v47 = vld [vmem:[%s0 + $0x68] sm:$0xff]
  %v48 = vld [vmem:[%s0 + $0x70] sm:$0xff]
  %v49 = vld [vmem:[%s0 + $0x78] sm:$0xff]
  %v50 = vld [vmem:[%s0 + $0x80] sm:$0xff]
  %v51 = vld [vmem:[%s0 + $0x88] sm:$0xff]
  %v52 = vld [vmem:[%s0 + $0x90] sm:$0xff]
  %v53 = vld [vmem:[%s0 + $0x98] sm:$0xff]
  %v54 = vld [vmem:[%s0 + $0xa0] sm:$0xff]
  %v55 = vld [vmem:[%s0 + $0xa8] sm:$0xff]
  %v56 = vld [vmem:[%s0 + $0xb0] sm:$0xff]
  %v57 = vld [vmem:[%s0 + $0xb8] sm:$0xff]
  %v58 = vld [vmem:[%s0 + $0xc0] sm:$0xff]
  %v59 = vld [vmem:[%s1] sm:$0xf]
  %v60 = vld [vmem:[%s1 + $0x4] sm:$0xf]
  %v61 = vld [vmem:[%s1 + $0x8] sm:$0xf]
  %v62 = vld [vmem:[%s1 + $0xc] sm:$0xf]
  %v63 = vld [vmem:[%s1 + $0x10] sm:$0xf]
  %v64 = vld [vmem:[%s1 + $0x14] sm:$0xf]
  %v65 = vld [vmem:[%s1 + $0x18] sm:$0xf]
  %v66 = vld [vmem:[%s1 + $0x1c] sm:$0xf]
  %v67 = vld [vmem:[%s1 + $0x20] sm:$0xf]
  %v68 = vld [vmem:[%s1 + $0x24] sm:$0xf]
  %v69 = vld [vmem:[%s1 + $0x28] sm:$0xf]
  %v70 = vld [vmem:[%s1 + $0x2c] sm:$0xf]
  %v71 = vld [vmem:[%s1 + $0x30] sm:$0xf]
  %v72 = vld [vmem:[%s1 + $0x34] sm:$0xf]
  %v73 = vld [vmem:[%s1 + $0x38] sm:$0xf]
  %v74 = vld [vmem:[%s1 + $0x3c] sm:$0xf]
  %v75 = vld [vmem:[%s1 + $0x40] sm:$0xf]
  %v76 = vld [vmem:[%s1 + $0x44] sm:$0xf]
  %v77 = vld [vmem:[%s1 + $0x48] sm:$0xf]
  %v78 = vld [vmem:[%s1 + $0x4c] sm:$0xf]
  %v79 = vld [vmem:[%s1 + $0x50] sm:$0xf]
  %v80 = vld [vmem:[%s1 + $0x54] sm:$0xf]
  %v81 = vld [vmem:[%s1 + $0x58] sm:$0xf]
  %v82 = vld [vmem:[%s1 + $0x5c] sm:$0xf]
  %v83 = vld [vmem:[%s1 + $0x60] sm:$0xf]
  %v84 = vld [vmem:[%s2] sm:$0xf]
  %v85 = vld [vmem:[%s2 + $0x4] sm:$0xf]
  %v86 = vld [vmem:[%s2 + $0x8] sm:$0x3]
  %v112 = vunpack.c.l.b16 %v59
  %v113 = vunpack.c.l.b16 %v60
  %v114 = vunpack.c.l.b16 %v61
  %v115 = vunpack.c.l.b16 %v62
  %v116 = vunpack.c.l.b16 %v63
  %v117 = vunpack.c.l.b16 %v64
  %v118 = vunpack.c.l.b16 %v65
  %v119 = vunpack.c.l.b16 %v66
  %v120 = vunpack.c.l.b16 %v67
  %v121 = vunpack.c.l.b16 %v68
  %v122 = vunpack.c.l.b16 %v69
  %v123 = vunpack.c.l.b16 %v70
  %v124 = vunpack.c.l.b16 %v71
  %v125 = vunpack.c.l.b16 %v72
  %v126 = vunpack.c.l.b16 %v73
  %v127 = vunpack.c.l.b16 %v74
  %v128 = vunpack.c.l.b16 %v75
  %v129 = vunpack.c.l.b16 %v76
  %v130 = vunpack.c.l.b16 %v77
  %v131 = vunpack.c.l.b16 %v78
  %v132 = vunpack.c.l.b16 %v79
  %v133 = vunpack.c.l.b16 %v80
  %v134 = vunpack.c.l.b16 %v81
  %v135 = vunpack.c.l.b16 %v82
  %v136 = vunpack.c.l.b16 %v83
  %v137 = vpack.c.b16 %v113, %v112
  %v138 = vpack.c.b16 %v115, %v114
  %v139 = vpack.c.b16 %v117, %v116
  %v140 = vpack.c.b16 %v119, %v118
  %v141 = vpack.c.b16 %v121, %v120
  %v142 = vpack.c.b16 %v123, %v122
  %v143 = vpack.c.b16 %v125, %v124
  %v144 = vpack.c.b16 %v127, %v126
  %v145 = vpack.c.b16 %v129, %v128
  %v146 = vpack.c.b16 %v131, %v130
  %v147 = vpack.c.b16 %v133, %v132
  %v148 = vpack.c.b16 %v135, %v134
  %v149 = vpack.c.b16 %v136, %v136
  %v153 = vunpack.c.l.b16 %v84
  %v154 = vunpack.c.l.b16 %v85
  %v155 = vunpack.c.l.b16 %v86
  %v156 = vpack.c.b16 %v154, %v153
  %v157 = vpack.c.b16 %v155, %v155
  %vm159 = vcmask 162816
  %v161 = vsel %vm159, %v137, 0
  %v164 = vsel %vm159, %v138, 0
  %v167 = vsel %vm159, %v139, 0
  %v170 = vsel %vm159, %v140, 0
  %v173 = vsel %vm159, %v141, 0
  %v176 = vsel %vm159, %v142, 0
  %v179 = vsel %vm159, %v143, 0
  %v182 = vsel %vm159, %v144, 0
  %v185 = vsel %vm159, %v145, 0
  %v188 = vsel %vm159, %v146, 0
  %v191 = vsel %vm159, %v147, 0
  %v194 = vsel %vm159, %v148, 0
  %v197 = vsel %vm159, %v149, 0
  %vm199 = vcmask 1041408
  %v201 = vsel %vm199, %v157, 0
  %203 = vmatpush.bf16.msra.mxu0 0
  %204 = vmatpush.bf16.msra.mxu0 0
  %205 = vmatpush.bf16.msra.mxu0 0
  %206 = vmatpush.bf16.msra.mxu0 0
  %207 = vmatpush.bf16.msra.mxu0 0
  %208 = vmatpush.bf16.msra.mxu0 0
  %209 = vmatpush.bf16.msra.mxu0 %v201
  %210 = vmatpush.bf16.msra.mxu0 %v156
  %211 = vmatmul.bf16.gmra.mxu0 %v161
  %v212 = vpop.f32.mrf.mxu0
  %v213 = vadd.f32 0.0, %v212
  %v214 = vpop.f32.mrf.mxu0
  %v215 = vadd.f32 0.0, %v214
  %216 = vmatmul.bf16.gmra.mxu0 %v164
  %v217 = vpop.f32.mrf.mxu0
  %v218 = vadd.f32 0.0, %v217
  %v219 = vpop.f32.mrf.mxu0
  %v220 = vadd.f32 0.0, %v219
  %221 = vmatmul.bf16.gmra.mxu0 %v167
  %v222 = vpop.f32.mrf.mxu0
  %v223 = vadd.f32 0.0, %v222
  %v224 = vpop.f32.mrf.mxu0
  %v225 = vadd.f32 0.0, %v224
  %226 = vmatmul.bf16.gmra.mxu0 %v170
  %v227 = vpop.f32.mrf.mxu0
  %v228 = vadd.f32 0.0, %v227
  %v229 = vpop.f32.mrf.mxu0
  %v230 = vadd.f32 0.0, %v229
  %231 = vmatmul.bf16.gmra.mxu0 %v173
  %v232 = vpop.f32.mrf.mxu0
  %v233 = vadd.f32 0.0, %v232
  %v234 = vpop.f32.mrf.mxu0
  %v235 = vadd.f32 0.0, %v234
  %236 = vmatmul.bf16.gmra.mxu0 %v176
  %v237 = vpop.f32.mrf.mxu0
  %v238 = vadd.f32 0.0, %v237
  %v239 = vpop.f32.mrf.mxu0
  %v240 = vadd.f32 0.0, %v239
  %241 = vmatmul.bf16.gmra.mxu0 %v179
  %v242 = vpop.f32.mrf.mxu0
  %v243 = vadd.f32 0.0, %v242
  %v244 = vpop.f32.mrf.mxu0
  %v245 = vadd.f32 0.0, %v244
  %246 = vmatmul.bf16.gmra.mxu0 %v182
  %v247 = vpop.f32.mrf.mxu0
  %v248 = vadd.f32 0.0, %v247
  %v249 = vpop.f32.mrf.mxu0
  %v250 = vadd.f32 0.0, %v249
  %251 = vmatmul.bf16.gmra.mxu0 %v185
  %v252 = vpop.f32.mrf.mxu0
  %v253 = vadd.f32 0.0, %v252
  %v254 = vpop.f32.mrf.mxu0
  %v255 = vadd.f32 0.0, %v254
  %256 = vmatmul.bf16.gmra.mxu0 %v188
  %v257 = vpop.f32.mrf.mxu0
  %v258 = vadd.f32 0.0, %v257
  %v259 = vpop.f32.mrf.mxu0
  %v260 = vadd.f32 0.0, %v259
  %261 = vmatmul.bf16.gmra.mxu0 %v191
  %v262 = vpop.f32.mrf.mxu0
  %v263 = vadd.f32 0.0, %v262
  %v264 = vpop.f32.mrf.mxu0
  %v265 = vadd.f32 0.0, %v264
  %266 = vmatmul.bf16.gmra.mxu0 %v194
  %v267 = vpop.f32.mrf.mxu0
  %v268 = vadd.f32 0.0, %v267
  %v269 = vpop.f32.mrf.mxu0
  %v270 = vadd.f32 0.0, %v269
  %271 = vmatmul.bf16.gmra.mxu0 %v197
  %v272 = vpop.f32.mrf.mxu0
  %v273 = vadd.f32 0.0, %v272
  %v274 = vpop.f32.mrf.mxu0
  %275 = vdwg.mxu0
  %v276 = vpack.c.bf16 %v215, %v213
  %v277 = vpack.c.bf16 %v220, %v218
  %v278 = vpack.c.bf16 %v225, %v223
  %v279 = vpack.c.bf16 %v230, %v228
  %v280 = vpack.c.bf16 %v235, %v233
  %v281 = vpack.c.bf16 %v240, %v238
  %v282 = vpack.c.bf16 %v245, %v243
  %v283 = vpack.c.bf16 %v250, %v248
  %v284 = vpack.c.bf16 %v255, %v253
  %v285 = vpack.c.bf16 %v260, %v258
  %v286 = vpack.c.bf16 %v265, %v263
  %v287 = vpack.c.bf16 %v270, %v268
  %v288 = vpack.c.bf16 %v273, %v273
  %v289 = vld [vmem:[%s3] sm:$0x1]
  %v291 = vperm.slane %v289, 0
  %v318 = vunpack.c.l.b16 %v34
  %v319 = vunpack.c.h.b16 %v34
  %v320 = vunpack.c.l.b16 %v35
  %v321 = vunpack.c.h.b16 %v35
  %v322 = vunpack.c.l.b16 %v36
  %v323 = vunpack.c.h.b16 %v36
  %v324 = vunpack.c.l.b16 %v37
  %v325 = vunpack.c.h.b16 %v37
  %v326 = vunpack.c.l.b16 %v38
  %v327 = vunpack.c.h.b16 %v38
  %v328 = vunpack.c.l.b16 %v39
  %v329 = vunpack.c.h.b16 %v39
  %v330 = vunpack.c.l.b16 %v40
  %v331 = vunpack.c.h.b16 %v40
  %v332 = vunpack.c.l.b16 %v41
  %v333 = vunpack.c.h.b16 %v41
  %v334 = vunpack.c.l.b16 %v42
  %v335 = vunpack.c.h.b16 %v42
  %v336 = vunpack.c.l.b16 %v43
  %v337 = vunpack.c.h.b16 %v43
  %v338 = vunpack.c.l.b16 %v44
  %v339 = vunpack.c.h.b16 %v44
  %v340 = vunpack.c.l.b16 %v45
  %v341 = vunpack.c.h.b16 %v45
  %v342 = vunpack.c.l.b16 %v46
  %v343 = vunpack.c.h.b16 %v46
  %v344 = vunpack.c.l.b16 %v47
  %v345 = vunpack.c.h.b16 %v47
  %v346 = vunpack.c.l.b16 %v48
  %v347 = vunpack.c.h.b16 %v48
  %v348 = vunpack.c.l.b16 %v49
  %v349 = vunpack.c.h.b16 %v49
  %v350 = vunpack.c.l.b16 %v50
  %v351 = vunpack.c.h.b16 %v50
  %v352 = vunpack.c.l.b16 %v51
  %v353 = vunpack.c.h.b16 %v51
  %v354 = vunpack.c.l.b16 %v52
  %v355 = vunpack.c.h.b16 %v52
  %v356 = vunpack.c.l.b16 %v53
  %v357 = vunpack.c.h.b16 %v53
  %v358 = vunpack.c.l.b16 %v54
  %v359 = vunpack.c.h.b16 %v54
  %v360 = vunpack.c.l.b16 %v55
  %v361 = vunpack.c.h.b16 %v55
  %v362 = vunpack.c.l.b16 %v56
  %v363 = vunpack.c.h.b16 %v56
  %v364 = vunpack.c.l.b16 %v57
  %v365 = vunpack.c.h.b16 %v57
  %v366 = vunpack.c.l.b16 %v58
  %v367 = vunpack.c.h.b16 %v58
  %v368 = vpack.c.b16 %v320, %v318
  %v369 = vpack.c.b16 %v321, %v319
  %v370 = vpack.c.b16 %v324, %v322
  %v371 = vpack.c.b16 %v325, %v323
  %v372 = vpack.c.b16 %v328, %v326
  %v373 = vpack.c.b16 %v329, %v327
  %v374 = vpack.c.b16 %v332, %v330
  %v375 = vpack.c.b16 %v333, %v331
  %v376 = vpack.c.b16 %v336, %v334
  %v377 = vpack.c.b16 %v337, %v335
  %v378 = vpack.c.b16 %v340, %v338
  %v379 = vpack.c.b16 %v341, %v339
  %v380 = vpack.c.b16 %v344, %v342
  %v381 = vpack.c.b16 %v345, %v343
  %v382 = vpack.c.b16 %v348, %v346
  %v383 = vpack.c.b16 %v349, %v347
  %v384 = vpack.c.b16 %v352, %v350
  %v385 = vpack.c.b16 %v353, %v351
  %v386 = vpack.c.b16 %v356, %v354
  %v387 = vpack.c.b16 %v357, %v355
  %v388 = vpack.c.b16 %v360, %v358
  %v389 = vpack.c.b16 %v361, %v359
  %v390 = vpack.c.b16 %v364, %v362
  %v391 = vpack.c.b16 %v365, %v363
  %v392 = vpack.c.b16 %v366, %v366
  %v393 = vpack.c.b16 %v367, %v367
  %vm407 = vcmask 588800
  %v409 = vsel %vm407, %v369, 0
  %v412 = vsel %vm407, %v371, 0
  %v415 = vsel %vm407, %v373, 0
  %v418 = vsel %vm407, %v375, 0
  %v421 = vsel %vm407, %v377, 0
  %v424 = vsel %vm407, %v379, 0
  %v427 = vsel %vm407, %v381, 0
  %v430 = vsel %vm407, %v383, 0
  %v433 = vsel %vm407, %v385, 0
  %v436 = vsel %vm407, %v387, 0
  %v439 = vsel %vm407, %v389, 0
  %v442 = vsel %vm407, %v391, 0
  %v445 = vsel %vm407, %v393, 0
  %vm447 = vcmask 1043456
  %v449 = vsel %vm447, %v288, 0
  %451 = vmatpush.bf16.msra.mxu0 %v283
  %452 = vmatpush.bf16.msra.mxu0 %v282
  %453 = vmatpush.bf16.msra.mxu0 %v281
  %454 = vmatpush.bf16.msra.mxu0 %v280
  %455 = vmatpush.bf16.msra.mxu0 %v279
  %456 = vmatpush.bf16.msra.mxu0 %v278
  %457 = vmatpush.bf16.msra.mxu0 %v277
  %458 = vmatpush.bf16.msra.mxu0 %v276
  %459 = vmatmul.bf16.gmra.mxu0 %v368
  %v460 = vpop.f32.mrf.mxu0
  %v461 = vadd.f32 %v291, %v460
  %v462 = vpop.f32.mrf.mxu0
  %v463 = vadd.f32 %v291, %v462
  %464 = vmatmul.bf16.gmra.mxu0 %v370
  %v465 = vpop.f32.mrf.mxu0
  %v466 = vadd.f32 %v291, %v465
  %v467 = vpop.f32.mrf.mxu0
  %v468 = vadd.f32 %v291, %v467
  %469 = vmatmul.bf16.gmra.mxu0 %v372
  %v470 = vpop.f32.mrf.mxu0
  %v471 = vadd.f32 %v291, %v470
  %v472 = vpop.f32.mrf.mxu0
  %v473 = vadd.f32 %v291, %v472
  %474 = vmatmul.bf16.gmra.mxu0 %v374
  %v475 = vpop.f32.mrf.mxu0
  %v476 = vadd.f32 %v291, %v475
  %v477 = vpop.f32.mrf.mxu0
  %v478 = vadd.f32 %v291, %v477
  %479 = vmatmul.bf16.gmra.mxu0 %v376
  %v480 = vpop.f32.mrf.mxu0
  %v481 = vadd.f32 %v291, %v480
  %v482 = vpop.f32.mrf.mxu0
  %v483 = vadd.f32 %v291, %v482
  %484 = vmatmul.bf16.gmra.mxu0 %v378
  %v485 = vpop.f32.mrf.mxu0
  %v486 = vadd.f32 %v291, %v485
  %v487 = vpop.f32.mrf.mxu0
  %v488 = vadd.f32 %v291, %v487
  %489 = vmatmul.bf16.gmra.mxu0 %v380
  %v490 = vpop.f32.mrf.mxu0
  %v491 = vadd.f32 %v291, %v490
  %v492 = vpop.f32.mrf.mxu0
  %v493 = vadd.f32 %v291, %v492
  %494 = vmatmul.bf16.gmra.mxu0 %v382
  %v495 = vpop.f32.mrf.mxu0
  %v496 = vadd.f32 %v291, %v495
  %v497 = vpop.f32.mrf.mxu0
  %v498 = vadd.f32 %v291, %v497
  %499 = vmatmul.bf16.gmra.mxu0 %v384
  %v500 = vpop.f32.mrf.mxu0
  %v501 = vadd.f32 %v291, %v500
  %v502 = vpop.f32.mrf.mxu0
  %v503 = vadd.f32 %v291, %v502
  %504 = vmatmul.bf16.gmra.mxu0 %v386
  %v505 = vpop.f32.mrf.mxu0
  %v506 = vadd.f32 %v291, %v505
  %v507 = vpop.f32.mrf.mxu0
  %v508 = vadd.f32 %v291, %v507
  %509 = vmatmul.bf16.gmra.mxu0 %v388
  %v510 = vpop.f32.mrf.mxu0
  %v511 = vadd.f32 %v291, %v510
  %v512 = vpop.f32.mrf.mxu0
  %v513 = vadd.f32 %v291, %v512
  %514 = vmatmul.bf16.gmra.mxu0 %v390
  %v515 = vpop.f32.mrf.mxu0
  %v516 = vadd.f32 %v291, %v515
  %v517 = vpop.f32.mrf.mxu0
  %v518 = vadd.f32 %v291, %v517
  %519 = vmatmul.bf16.gmra.mxu0 %v392
  %v520 = vpop.f32.mrf.mxu0
  %v521 = vadd.f32 %v291, %v520
  %v522 = vpop.f32.mrf.mxu0
  %523 = vdwg.mxu0
  %524 = vmatpush.bf16.msra.mxu0 0
  %525 = vmatpush.bf16.msra.mxu0 0
  %526 = vmatpush.bf16.msra.mxu0 0
  %527 = vmatpush.bf16.msra.mxu0 %v449
  %528 = vmatpush.bf16.msra.mxu0 %v287
  %529 = vmatpush.bf16.msra.mxu0 %v286
  %530 = vmatpush.bf16.msra.mxu0 %v285
  %531 = vmatpush.bf16.msra.mxu0 %v284
  %532 = vmatmul.bf16.gmra.mxu0 %v409
  %v533 = vpop.f32.mrf.mxu0
  %v534 = vadd.f32 %v461, %v533
  %v535 = vpop.f32.mrf.mxu0
  %v536 = vadd.f32 %v463, %v535
  %537 = vmatmul.bf16.gmra.mxu0 %v412
  %v538 = vpop.f32.mrf.mxu0
  %v539 = vadd.f32 %v466, %v538
  %v540 = vpop.f32.mrf.mxu0
  %v541 = vadd.f32 %v468, %v540
  %542 = vmatmul.bf16.gmra.mxu0 %v415
  %v543 = vpop.f32.mrf.mxu0
  %v544 = vadd.f32 %v471, %v543
  %v545 = vpop.f32.mrf.mxu0
  %v546 = vadd.f32 %v473, %v545
  %547 = vmatmul.bf16.gmra.mxu0 %v418
  %v548 = vpop.f32.mrf.mxu0
  %v549 = vadd.f32 %v476, %v548
  %v550 = vpop.f32.mrf.mxu0
  %v551 = vadd.f32 %v478, %v550
  %552 = vmatmul.bf16.gmra.mxu0 %v421
  %v553 = vpop.f32.mrf.mxu0
  %v554 = vadd.f32 %v481, %v553
  %v555 = vpop.f32.mrf.mxu0
  %v556 = vadd.f32 %v483, %v555
  %557 = vmatmul.bf16.gmra.mxu0 %v424
  %v558 = vpop.f32.mrf.mxu0
  %v559 = vadd.f32 %v486, %v558
  %v560 = vpop.f32.mrf.mxu0
  %v561 = vadd.f32 %v488, %v560
  %562 = vmatmul.bf16.gmra.mxu0 %v427
  %v563 = vpop.f32.mrf.mxu0
  %v564 = vadd.f32 %v491, %v563
  %v565 = vpop.f32.mrf.mxu0
  %v566 = vadd.f32 %v493, %v565
  %567 = vmatmul.bf16.gmra.mxu0 %v430
  %v568 = vpop.f32.mrf.mxu0
  %v569 = vadd.f32 %v496, %v568
  %v570 = vpop.f32.mrf.mxu0
  %v571 = vadd.f32 %v498, %v570
  %572 = vmatmul.bf16.gmra.mxu0 %v433
  %v573 = vpop.f32.mrf.mxu0
  %v574 = vadd.f32 %v501, %v573
  %v575 = vpop.f32.mrf.mxu0
  %v576 = vadd.f32 %v503, %v575
  %577 = vmatmul.bf16.gmra.mxu0 %v436
  %v578 = vpop.f32.mrf.mxu0
  %v579 = vadd.f32 %v506, %v578
  %v580 = vpop.f32.mrf.mxu0
  %v581 = vadd.f32 %v508, %v580
  %582 = vmatmul.bf16.gmra.mxu0 %v439
  %v583 = vpop.f32.mrf.mxu0
  %v584 = vadd.f32 %v511, %v583
  %v585 = vpop.f32.mrf.mxu0
  %v586 = vadd.f32 %v513, %v585
  %587 = vmatmul.bf16.gmra.mxu0 %v442
  %v588 = vpop.f32.mrf.mxu0
  %v589 = vadd.f32 %v516, %v588
  %v590 = vpop.f32.mrf.mxu0
  %v591 = vadd.f32 %v518, %v590
  %592 = vmatmul.bf16.gmra.mxu0 %v445
  %v593 = vpop.f32.mrf.mxu0
  %v594 = vadd.f32 %v521, %v593
  %v595 = vpop.f32.mrf.mxu0
  %596 = vdwg.mxu0
  %v597 = vmax.f32 %v534, 0.0
  %v598 = vmax.f32 %v536, 0.0
  %v599 = vmax.f32 %v539, 0.0
  %v600 = vmax.f32 %v541, 0.0
  %v601 = vmax.f32 %v544, 0.0
  %v602 = vmax.f32 %v546, 0.0
  %v603 = vmax.f32 %v549, 0.0
  %v604 = vmax.f32 %v551, 0.0
  %v605 = vmax.f32 %v554, 0.0
  %v606 = vmax.f32 %v556, 0.0
  %v607 = vmax.f32 %v559, 0.0
  %v608 = vmax.f32 %v561, 0.0
  %v609 = vmax.f32 %v564, 0.0
  %v610 = vmax.f32 %v566, 0.0
  %v611 = vmax.f32 %v569, 0.0
  %v612 = vmax.f32 %v571, 0.0
  %v613 = vmax.f32 %v574, 0.0
  %v614 = vmax.f32 %v576, 0.0
  %v615 = vmax.f32 %v579, 0.0
  %v616 = vmax.f32 %v581, 0.0
  %v617 = vmax.f32 %v584, 0.0
  %v618 = vmax.f32 %v586, 0.0
  %v619 = vmax.f32 %v589, 0.0
  %v620 = vmax.f32 %v591, 0.0
  %v621 = vmax.f32 %v594, 0.0
  %v622 = vpack.c.bf16 %v598, %v597
  %v623 = vpack.c.bf16 %v600, %v599
  %v624 = vpack.c.bf16 %v602, %v601
  %v625 = vpack.c.bf16 %v604, %v603
  %v626 = vpack.c.bf16 %v606, %v605
  %v627 = vpack.c.bf16 %v608, %v607
  %v628 = vpack.c.bf16 %v610, %v609
  %v629 = vpack.c.bf16 %v612, %v611
  %v630 = vpack.c.bf16 %v614, %v613
  %v631 = vpack.c.bf16 %v616, %v615
  %v632 = vpack.c.bf16 %v618, %v617
  %v633 = vpack.c.bf16 %v620, %v619
  %v634 = vpack.c.bf16 %v621, %v621
  %v635 = vld [vmem:[%s4] sm:$0xf]
  %v636 = vld [vmem:[%s4 + $0x4] sm:$0xf]
  %v637 = vld [vmem:[%s4 + $0x8] sm:$0xf]
  %v638 = vld [vmem:[%s4 + $0xc] sm:$0xf]
  %v639 = vld [vmem:[%s4 + $0x10] sm:$0xf]
  %v640 = vld [vmem:[%s4 + $0x14] sm:$0xf]
  %v641 = vld [vmem:[%s4 + $0x18] sm:$0xf]
  %v642 = vld [vmem:[%s4 + $0x1c] sm:$0xf]
  %v651 = vunpack.c.l.b16 %v635
  %v652 = vunpack.c.l.b16 %v636
  %v653 = vunpack.c.l.b16 %v637
  %v654 = vunpack.c.l.b16 %v638
  %v655 = vunpack.c.l.b16 %v639
  %v656 = vunpack.c.l.b16 %v640
  %v657 = vunpack.c.l.b16 %v641
  %v658 = vunpack.c.l.b16 %v642
  %v659 = vpack.c.b16 %v652, %v651
  %v660 = vpack.c.b16 %v654, %v653
  %v661 = vpack.c.b16 %v656, %v655
  %v662 = vpack.c.b16 %v658, %v657
  %vm667 = vcmask 523264
  %v669 = vsel %vm667, %v622, 0
  %v672 = vsel %vm667, %v623, 0
  %v675 = vsel %vm667, %v624, 0
  %v678 = vsel %vm667, %v625, 0
  %v681 = vsel %vm667, %v626, 0
  %v684 = vsel %vm667, %v627, 0
  %v687 = vsel %vm667, %v628, 0
  %v690 = vsel %vm667, %v629, 0
  %v693 = vsel %vm667, %v630, 0
  %v696 = vsel %vm667, %v631, 0
  %v699 = vsel %vm667, %v632, 0
  %v702 = vsel %vm667, %v633, 0
  %v705 = vsel %vm667, %v634, 0
  %707 = vmatpush.bf16.msra.mxu0 0
  %708 = vmatpush.bf16.msra.mxu0 0
  %709 = vmatpush.bf16.msra.mxu0 0
  %710 = vmatpush.bf16.msra.mxu0 0
  %711 = vmatpush.bf16.msra.mxu0 %v662
  %712 = vmatpush.bf16.msra.mxu0 %v661
  %713 = vmatpush.bf16.msra.mxu0 %v660
  %714 = vmatpush.bf16.msra.mxu0 %v659
  %715 = vmatmul.bf16.gmra.mxu0 %v669
  %v716 = vpop.f32.mrf.mxu0
  %v717 = vadd.f32 0.0, %v716
  %v718 = vpop.f32.mrf.mxu0
  %v719 = vadd.f32 0.0, %v718
  %720 = vmatmul.bf16.gmra.mxu0 %v672
  %v721 = vpop.f32.mrf.mxu0
  %v722 = vadd.f32 0.0, %v721
  %v723 = vpop.f32.mrf.mxu0
  %v724 = vadd.f32 0.0, %v723
  %725 = vmatmul.bf16.gmra.mxu0 %v675
  %v726 = vpop.f32.mrf.mxu0
  %v727 = vadd.f32 0.0, %v726
  %v728 = vpop.f32.mrf.mxu0
  %v729 = vadd.f32 0.0, %v728
  %730 = vmatmul.bf16.gmra.mxu0 %v678
  %v731 = vpop.f32.mrf.mxu0
  %v732 = vadd.f32 0.0, %v731
  %v733 = vpop.f32.mrf.mxu0
  %v734 = vadd.f32 0.0, %v733
  %735 = vmatmul.bf16.gmra.mxu0 %v681
  %v736 = vpop.f32.mrf.mxu0
  %v737 = vadd.f32 0.0, %v736
  %v738 = vpop.f32.mrf.mxu0
  %v739 = vadd.f32 0.0, %v738
  %740 = vmatmul.bf16.gmra.mxu0 %v684
  %v741 = vpop.f32.mrf.mxu0
  %v742 = vadd.f32 0.0, %v741
  %v743 = vpop.f32.mrf.mxu0
  %v744 = vadd.f32 0.0, %v743
  %745 = vmatmul.bf16.gmra.mxu0 %v687
  %v746 = vpop.f32.mrf.mxu0
  %v747 = vadd.f32 0.0, %v746
  %v748 = vpop.f32.mrf.mxu0
  %v749 = vadd.f32 0.0, %v748
  %750 = vmatmul.bf16.gmra.mxu0 %v690
  %v751 = vpop.f32.mrf.mxu0
  %v752 = vadd.f32 0.0, %v751
  %v753 = vpop.f32.mrf.mxu0
  %v754 = vadd.f32 0.0, %v753
  %755 = vmatmul.bf16.gmra.mxu0 %v693
  %v756 = vpop.f32.mrf.mxu0
  %v757 = vadd.f32 0.0, %v756
  %v758 = vpop.f32.mrf.mxu0
  %v759 = vadd.f32 0.0, %v758
  %760 = vmatmul.bf16.gmra.mxu0 %v696
  %v761 = vpop.f32.mrf.mxu0
  %v762 = vadd.f32 0.0, %v761
  %v763 = vpop.f32.mrf.mxu0
  %v764 = vadd.f32 0.0, %v763
  %765 = vmatmul.bf16.gmra.mxu0 %v699
  %v766 = vpop.f32.mrf.mxu0
  %v767 = vadd.f32 0.0, %v766
  %v768 = vpop.f32.mrf.mxu0
  %v769 = vadd.f32 0.0, %v768
  %770 = vmatmul.bf16.gmra.mxu0 %v702
  %v771 = vpop.f32.mrf.mxu0
  %v772 = vadd.f32 0.0, %v771
  %v773 = vpop.f32.mrf.mxu0
  %v774 = vadd.f32 0.0, %v773
  %775 = vmatmul.bf16.gmra.mxu0 %v705
  %v776 = vpop.f32.mrf.mxu0
  %v777 = vadd.f32 0.0, %v776
  %v778 = vpop.f32.mrf.mxu0
  %779 = vdwg.mxu0
  %v780 = vpack.c.bf16 %v719, %v717
  %v781 = vpack.c.bf16 %v724, %v722
  %v782 = vpack.c.bf16 %v729, %v727
  %v783 = vpack.c.bf16 %v734, %v732
  %v784 = vpack.c.bf16 %v739, %v737
  %v785 = vpack.c.bf16 %v744, %v742
  %v786 = vpack.c.bf16 %v749, %v747
  %v787 = vpack.c.bf16 %v754, %v752
  %v788 = vpack.c.bf16 %v759, %v757
  %v789 = vpack.c.bf16 %v764, %v762
  %v790 = vpack.c.bf16 %v769, %v767
  %v791 = vpack.c.bf16 %v774, %v772
  %v792 = vpack.c.bf16 %v777, %v777
  %v793 = vld [vmem:[%s5] sm:$0x1]
  %v795 = vperm.slane %v793, 0
  %v798 = vsel %vm447, %v792, 0
  %800 = vmatpush.bf16.msra.mxu0 %v787
  %801 = vmatpush.bf16.msra.mxu0 %v786
  %802 = vmatpush.bf16.msra.mxu0 %v785
  %803 = vmatpush.bf16.msra.mxu0 %v784
  %804 = vmatpush.bf16.msra.mxu0 %v783
  %805 = vmatpush.bf16.msra.mxu0 %v782
  %806 = vmatpush.bf16.msra.mxu0 %v781
  %807 = vmatpush.bf16.msra.mxu0 %v780
  %808 = vmatmul.bf16.gmra.mxu0 %v368
  %v809 = vpop.f32.mrf.mxu0
  %v810 = vadd.f32 %v795, %v809
  %v811 = vpop.f32.mrf.mxu0
  %v812 = vadd.f32 %v795, %v811
  %813 = vmatmul.bf16.gmra.mxu0 %v370
  %v814 = vpop.f32.mrf.mxu0
  %v815 = vadd.f32 %v795, %v814
  %v816 = vpop.f32.mrf.mxu0
  %v817 = vadd.f32 %v795, %v816
  %818 = vmatmul.bf16.gmra.mxu0 %v372
  %v819 = vpop.f32.mrf.mxu0
  %v820 = vadd.f32 %v795, %v819
  %v821 = vpop.f32.mrf.mxu0
  %v822 = vadd.f32 %v795, %v821
  %823 = vmatmul.bf16.gmra.mxu0 %v374
  %v824 = vpop.f32.mrf.mxu0
  %v825 = vadd.f32 %v795, %v824
  %v826 = vpop.f32.mrf.mxu0
  %v827 = vadd.f32 %v795, %v826
  %828 = vmatmul.bf16.gmra.mxu0 %v376
  %v829 = vpop.f32.mrf.mxu0
  %v830 = vadd.f32 %v795, %v829
  %v831 = vpop.f32.mrf.mxu0
  %v832 = vadd.f32 %v795, %v831
  %833 = vmatmul.bf16.gmra.mxu0 %v378
  %v834 = vpop.f32.mrf.mxu0
  %v835 = vadd.f32 %v795, %v834
  %v836 = vpop.f32.mrf.mxu0
  %v837 = vadd.f32 %v795, %v836
  %838 = vmatmul.bf16.gmra.mxu0 %v380
  %v839 = vpop.f32.mrf.mxu0
  %v840 = vadd.f32 %v795, %v839
  %v841 = vpop.f32.mrf.mxu0
  %v842 = vadd.f32 %v795, %v841
  %843 = vmatmul.bf16.gmra.mxu0 %v382
  %v844 = vpop.f32.mrf.mxu0
  %v845 = vadd.f32 %v795, %v844
  %v846 = vpop.f32.mrf.mxu0
  %v847 = vadd.f32 %v795, %v846
  %848 = vmatmul.bf16.gmra.mxu0 %v384
  %v849 = vpop.f32.mrf.mxu0
  %v850 = vadd.f32 %v795, %v849
  %v851 = vpop.f32.mrf.mxu0
  %v852 = vadd.f32 %v795, %v851
  %853 = vmatmul.bf16.gmra.mxu0 %v386
  %v854 = vpop.f32.mrf.mxu0
  %v855 = vadd.f32 %v795, %v854
  %v856 = vpop.f32.mrf.mxu0
  %v857 = vadd.f32 %v795, %v856
  %858 = vmatmul.bf16.gmra.mxu0 %v388
  %v859 = vpop.f32.mrf.mxu0
  %v860 = vadd.f32 %v795, %v859
  %v861 = vpop.f32.mrf.mxu0
  %v862 = vadd.f32 %v795, %v861
  %863 = vmatmul.bf16.gmra.mxu0 %v390
  %v864 = vpop.f32.mrf.mxu0
  %v865 = vadd.f32 %v795, %v864
  %v866 = vpop.f32.mrf.mxu0
  %v867 = vadd.f32 %v795, %v866
  %868 = vmatmul.bf16.gmra.mxu0 %v392
  %v869 = vpop.f32.mrf.mxu0
  %v870 = vadd.f32 %v795, %v869
  %v871 = vpop.f32.mrf.mxu0
  %872 = vdwg.mxu0
  %873 = vmatpush.bf16.msra.mxu0 0
  %874 = vmatpush.bf16.msra.mxu0 0
  %875 = vmatpush.bf16.msra.mxu0 0
  %876 = vmatpush.bf16.msra.mxu0 %v798
  %877 = vmatpush.bf16.msra.mxu0 %v791
  %878 = vmatpush.bf16.msra.mxu0 %v790
  %879 = vmatpush.bf16.msra.mxu0 %v789
  %880 = vmatpush.bf16.msra.mxu0 %v788
  %881 = vmatmul.bf16.gmra.mxu0 %v409
  %v882 = vpop.f32.mrf.mxu0
  %v883 = vadd.f32 %v810, %v882
  %v884 = vpop.f32.mrf.mxu0
  %v885 = vadd.f32 %v812, %v884
  %886 = vmatmul.bf16.gmra.mxu0 %v412
  %v887 = vpop.f32.mrf.mxu0
  %v888 = vadd.f32 %v815, %v887
  %v889 = vpop.f32.mrf.mxu0
  %v890 = vadd.f32 %v817, %v889
  %891 = vmatmul.bf16.gmra.mxu0 %v415
  %v892 = vpop.f32.mrf.mxu0
  %v893 = vadd.f32 %v820, %v892
  %v894 = vpop.f32.mrf.mxu0
  %v895 = vadd.f32 %v822, %v894
  %896 = vmatmul.bf16.gmra.mxu0 %v418
  %v897 = vpop.f32.mrf.mxu0
  %v898 = vadd.f32 %v825, %v897
  %v899 = vpop.f32.mrf.mxu0
  %v900 = vadd.f32 %v827, %v899
  %901 = vmatmul.bf16.gmra.mxu0 %v421
  %v902 = vpop.f32.mrf.mxu0
  %v903 = vadd.f32 %v830, %v902
  %v904 = vpop.f32.mrf.mxu0
  %v905 = vadd.f32 %v832, %v904
  %906 = vmatmul.bf16.gmra.mxu0 %v424
  %v907 = vpop.f32.mrf.mxu0
  %v908 = vadd.f32 %v835, %v907
  %v909 = vpop.f32.mrf.mxu0
  %v910 = vadd.f32 %v837, %v909
  %911 = vmatmul.bf16.gmra.mxu0 %v427
  %v912 = vpop.f32.mrf.mxu0
  %v913 = vadd.f32 %v840, %v912
  %v914 = vpop.f32.mrf.mxu0
  %v915 = vadd.f32 %v842, %v914
  %916 = vmatmul.bf16.gmra.mxu0 %v430
  %v917 = vpop.f32.mrf.mxu0
  %v918 = vadd.f32 %v845, %v917
  %v919 = vpop.f32.mrf.mxu0
  %v920 = vadd.f32 %v847, %v919
  %921 = vmatmul.bf16.gmra.mxu0 %v433
  %v922 = vpop.f32.mrf.mxu0
  %v923 = vadd.f32 %v850, %v922
  %v924 = vpop.f32.mrf.mxu0
  %v925 = vadd.f32 %v852, %v924
  %926 = vmatmul.bf16.gmra.mxu0 %v436
  %v927 = vpop.f32.mrf.mxu0
  %v928 = vadd.f32 %v855, %v927
  %v929 = vpop.f32.mrf.mxu0
  %v930 = vadd.f32 %v857, %v929
  %931 = vmatmul.bf16.gmra.mxu0 %v439
  %v932 = vpop.f32.mrf.mxu0
  %v933 = vadd.f32 %v860, %v932
  %v934 = vpop.f32.mrf.mxu0
  %v935 = vadd.f32 %v862, %v934
  %936 = vmatmul.bf16.gmra.mxu0 %v442
  %v937 = vpop.f32.mrf.mxu0
  %v938 = vadd.f32 %v865, %v937
  %v939 = vpop.f32.mrf.mxu0
  %v940 = vadd.f32 %v867, %v939
  %941 = vmatmul.bf16.gmra.mxu0 %v445
  %v942 = vpop.f32.mrf.mxu0
  %v943 = vadd.f32 %v870, %v942
  %v944 = vpop.f32.mrf.mxu0
  %945 = vdwg.mxu0
  %v946 = vmax.f32 %v883, 0.0
  %v947 = vmax.f32 %v885, 0.0
  %v948 = vmax.f32 %v888, 0.0
  %v949 = vmax.f32 %v890, 0.0
  %v950 = vmax.f32 %v893, 0.0
  %v951 = vmax.f32 %v895, 0.0
  %v952 = vmax.f32 %v898, 0.0
  %v953 = vmax.f32 %v900, 0.0
  %v954 = vmax.f32 %v903, 0.0
  %v955 = vmax.f32 %v905, 0.0
  %v956 = vmax.f32 %v908, 0.0
  %v957 = vmax.f32 %v910, 0.0
  %v958 = vmax.f32 %v913, 0.0
  %v959 = vmax.f32 %v915, 0.0
  %v960 = vmax.f32 %v918, 0.0
  %v961 = vmax.f32 %v920, 0.0
  %v962 = vmax.f32 %v923, 0.0
  %v963 = vmax.f32 %v925, 0.0
  %v964 = vmax.f32 %v928, 0.0
  %v965 = vmax.f32 %v930, 0.0
  %v966 = vmax.f32 %v933, 0.0
  %v967 = vmax.f32 %v935, 0.0
  %v968 = vmax.f32 %v938, 0.0
  %v969 = vmax.f32 %v940, 0.0
  %v970 = vmax.f32 %v943, 0.0
  %v971 = vld [vmem:[%s6] sm:$0x77]
  %973 = vst [vmem:[#allocation1] ss:$2 sm:$0xff] %v971
  %v974 = vld.sshfl [vmem:[#allocation1] sm:$0xff pattern:$0x75316420]
  %v975 = vld.sshfl [vmem:[#allocation1 + $0x8] sm:$0xff pattern:$0x75316420]
  %v977 = vsel %vm407, %v975, 0
  %979 = vmatpush.msra.mxu0 %v961
  %980 = vmatpush.msra.mxu0 %v960
  %981 = vmatpush.msra.mxu0 %v959
  %982 = vmatpush.msra.mxu0 %v958
  %983 = vmatpush.msra.mxu0 %v957
  %984 = vmatpush.msra.mxu0 %v956
  %985 = vmatpush.msra.mxu0 %v955
  %986 = vmatpush.msra.mxu0 %v954
  %987 = vmatpush.msra.mxu0 %v953
  %988 = vmatpush.msra.mxu0 %v952
  %989 = vmatpush.msra.mxu0 %v951
  %990 = vmatpush.msra.mxu0 %v950
  %991 = vmatpush.msra.mxu0 %v949
  %992 = vmatpush.msra.mxu0 %v948
  %993 = vmatpush.msra.mxu0 %v947
  %994 = vmatpush.msra.mxu0 %v946
  %995 = vmatmul.f32.gmra.mxu0 %v974
  %v996 = vpop.f32.mrf.mxu0
  %v997 = vadd.f32 0.0, %v996
  %998 = vdwg.mxu0
  %999 = vmatpush.msra.mxu0 0.0
  %1000 = vmatpush.msra.mxu0 0.0
  %1001 = vmatpush.msra.mxu0 0.0
  %1002 = vmatpush.msra.mxu0 0.0
  %1003 = vmatpush.msra.mxu0 0.0
  %1004 = vmatpush.msra.mxu0 0.0
  %1005 = vmatpush.msra.mxu0 0.0
  %1006 = vmatpush.msra.mxu0 %v970
  %1007 = vmatpush.msra.mxu0 %v969
  %1008 = vmatpush.msra.mxu0 %v968
  %1009 = vmatpush.msra.mxu0 %v967
  %1010 = vmatpush.msra.mxu0 %v966
  %1011 = vmatpush.msra.mxu0 %v965
  %1012 = vmatpush.msra.mxu0 %v964
  %1013 = vmatpush.msra.mxu0 %v963
  %1014 = vmatpush.msra.mxu0 %v962
  %1015 = vmatmul.f32.gmra.mxu0 %v977
  %v1016 = vpop.f32.mrf.mxu0
  %v1017 = vadd.f32 %v997, %v1016
  %1018 = vdwg.mxu0
  %v1019 = vld [vmem:[%s7] sm:$0xff]
  %v1020 = vld [vmem:[%s7 + $0x8] sm:$0xff]
  %v1021 = vld [vmem:[%s7 + $0x10] sm:$0xff]
  %v1022 = vld [vmem:[%s7 + $0x18] sm:$0xff]
  %v1023 = vld [vmem:[%s7 + $0x20] sm:$0xff]
  %v1024 = vld [vmem:[%s7 + $0x28] sm:$0xff]
  %v1025 = vld [vmem:[%s7 + $0x30] sm:$0xff]
  %v1026 = vld [vmem:[%s7 + $0x38] sm:$0xff]
  %s1027 = sld [smem:[#allocation2]]
  %v1028 = vstv %s1027
  %v1030 = vsel %vm667, %v1017, 0
  %1032 = vmatpush.msra.mxu0 0.0
  %1033 = vmatpush.msra.mxu0 0.0
  %1034 = vmatpush.msra.mxu0 0.0
  %1035 = vmatpush.msra.mxu0 0.0
  %1036 = vmatpush.msra.mxu0 0.0
  %1037 = vmatpush.msra.mxu0 0.0
  %1038 = vmatpush.msra.mxu0 0.0
  %1039 = vmatpush.msra.mxu0 0.0
  %1040 = vmatpush.msra.mxu0 %v1026
  %1041 = vmatpush.msra.mxu0 %v1025
  %1042 = vmatpush.msra.mxu0 %v1024
  %1043 = vmatpush.msra.mxu0 %v1023
  %1044 = vmatpush.msra.mxu0 %v1022
  %1045 = vmatpush.msra.mxu0 %v1021
  %1046 = vmatpush.msra.mxu0 %v1020
  %1047 = vmatpush.msra.mxu0 %v1019
  %1048 = vmatmul.f32.gmra.mxu0 %v1030
  %v1049 = vpop.f32.mrf.mxu0
  %v1050 = vadd.f32 %v1028, %v1049
  %1051 = vdwg.mxu0
  %1052 = vst [vmem:[%s9] sm:$0x7] %v1050
  // Predicated region
  $region38: #{_forward_impl.1} parent=0 // pred_check
    _
  $region39: #{_forward_impl.1} parent=0 // pred_check_branch
    %1054 = sbr.rel (0) target = $region41
  $region40: #{_forward_impl.1} parent=0 // pred_region
    _
  $region41: #{_forward_impl.1} parent=0 // pred_fallthru
    _
  // Predicated region
  $region42: #{_forward_impl.1} parent=0 // pred_check
    _
  $region43: #{_forward_impl.1} parent=0 // pred_check_branch
    %1056 = sbr.rel (0) target = $region45
  $region44: #{_forward_impl.1} parent=0 // pred_region
    _
  $region45: #{_forward_impl.1} parent=0 // pred_fallthru
    _

</llo_original>
